<compile_context>
chip_gen: v7x
topology: tpu7x:2x2x1
jax: 0.10.0
libtpu: 0.0.40
codegen_flags: <defaults>
</compile_context>

<pallas_src>
import jax
import jax.numpy as jnp
from jax.experimental import pallas as pl
from jax.experimental.pallas import tpu as pltpu

_LANES = 128
_MAX_BLOCK_ROWS = 1024      # 1024 x 128 x f32 = 512 KiB per block
_MAX_PARTIALS = 2           # outer "parallel" grid axis (megacore on v7x)
_VMEM_LIMIT = 32 * 1024 * 1024


# --------------------------------------------------------------------------
# Kernels
# --------------------------------------------------------------------------
def _l1_sum_kernel(x_ref, y_ref, out_ref, acc_ref):
    """Accumulate |x - y| into a block-shaped scratch; emit (8,128) partial."""
    s = pl.program_id(1)

    @pl.when(s == 0)
    def _():
        acc_ref[...] = jnp.zeros_like(acc_ref)

    acc_ref[...] += jnp.abs(x_ref[...] - y_ref[...])

    @pl.when(s == pl.num_programs(1) - 1)
    def _():
        blk = acc_ref[...]
        # Fold (block_rows, 128) -> (8, 128) once per partial (tile-aligned).
        out_ref[...] = blk.reshape(blk.shape[0] // 8, 8, blk.shape[1]).sum(axis=0)


def _l1_none_complex_kernel(xr_ref, xi_ref, yr_ref, yi_ref, o_ref):
    """loss_real + loss_imag, fused, one lane-dense output block."""
    o_ref[...] = (jnp.abs(xr_ref[...] - yr_ref[...])
                  + jnp.abs(xi_ref[...] - yi_ref[...]))


def _l1_none_real_kernel(x_ref, y_ref, o_ref):
    o_ref[...] = jnp.abs(x_ref[...] - y_ref[...])


# --------------------------------------------------------------------------
# Helpers
# --------------------------------------------------------------------------
def _round_up(n: int, m: int) -> int:
    return ((n + m - 1) // m) * m


def _block_rows_for(rows: int) -> int:
    return min(_MAX_BLOCK_ROWS, max(8, _round_up(rows, 8)))


def _pad_reshape(x_flat, padded_rows: int):
    n = x_flat.shape[0]
    n_padded = padded_rows * _LANES
    if n_padded > n:
        x_flat = jnp.pad(x_flat, (0, n_padded - n))
    return x_flat.reshape(padded_rows, _LANES)


def _as_interleaved_flat_f32(x):
    """Interleave real/imag into a single flat float32 stream."""
    x = jnp.asarray(x)
    if jnp.iscomplexobj(x):
        x = jnp.stack((jnp.real(x), jnp.imag(x)), axis=-1)
    return x.astype(jnp.float32).reshape(-1)


# --------------------------------------------------------------------------
# Pallas-backed reductions
# --------------------------------------------------------------------------
def _l1_sum(xf, yf):
    """sum(|xf - yf|) via Pallas; xf/yf are flat float32 arrays of equal size."""
    n = xf.shape[0]
    rows = pl.cdiv(n, _LANES)
    block_rows = _block_rows_for(rows)
    n_blocks_raw = pl.cdiv(rows, block_rows)
    num_partials = _MAX_PARTIALS if n_blocks_raw >= _MAX_PARTIALS else 1
    n_blocks = _round_up(n_blocks_raw, num_partials)
    n_steps = n_blocks // num_partials
    padded_rows = n_blocks * block_rows

    xp = _pad_reshape(xf, padded_rows)
    yp = _pad_reshape(yf, padded_rows)

    in_spec = pl.BlockSpec((block_rows, _LANES),
                           lambda p, s, ns=n_steps: (p * ns + s, 0))

    partials = pl.pallas_call(
        _l1_sum_kernel,
        out_shape=jax.ShapeDtypeStruct((num_partials * 8, _LANES), jnp.float32),
        grid_spec=pltpu.PrefetchScalarGridSpec(
            num_scalar_prefetch=0,
            grid=(num_partials, n_steps),
            in_specs=[in_spec, in_spec],
            out_specs=pl.BlockSpec((8, _LANES), lambda p, s: (p, 0)),
            scratch_shapes=[pltpu.VMEM((block_rows, _LANES), jnp.float32)],
        ),
        compiler_params=pltpu.CompilerParams(
            dimension_semantics=("parallel", "arbitrary"),
            vmem_limit_bytes=_VMEM_LIMIT),
    )(xp, yp)

    # Tiny final reduction (num_partials * 8 * 128 elements) in plain JAX.
    return jnp.sum(partials)


def _l1_none(inp, tgt, shape):
    """Elementwise (loss_real + loss_imag) via Pallas, fused in-kernel."""
    is_complex = jnp.iscomplexobj(inp)

    n = 1
    for s in shape:
        n *= s
    rows = pl.cdiv(max(n, 1), _LANES)
    block_rows = _block_rows_for(rows)
    n_blocks = pl.cdiv(rows, block_rows)
    padded_rows = n_blocks * block_rows

    spec = pl.BlockSpec((block_rows, _LANES), lambda i: (i, 0))

    if is_complex:
        planes = [
            _pad_reshape(jnp.real(inp).astype(jnp.float32).reshape(-1), padded_rows),
            _pad_reshape(jnp.imag(inp).astype(jnp.float32).reshape(-1), padded_rows),
            _pad_reshape(jnp.real(tgt).astype(jnp.float32).reshape(-1), padded_rows),
            _pad_reshape(jnp.imag(tgt).astype(jnp.float32).reshape(-1), padded_rows),
        ]
        kernel = _l1_none_complex_kernel
    else:
        planes = [
            _pad_reshape(jnp.asarray(inp).astype(jnp.float32).reshape(-1), padded_rows),
            _pad_reshape(jnp.asarray(tgt).astype(jnp.float32).reshape(-1), padded_rows),
        ]
        kernel = _l1_none_real_kernel

    out = pl.pallas_call(
        kernel,
        out_shape=jax.ShapeDtypeStruct((padded_rows, _LANES), jnp.float32),
        grid_spec=pltpu.PrefetchScalarGridSpec(
            num_scalar_prefetch=0,
            grid=(n_blocks,),
            in_specs=[spec] * len(planes),
            out_specs=spec,
        ),
        compiler_params=pltpu.CompilerParams(
            dimension_semantics=("parallel",),
            vmem_limit_bytes=_VMEM_LIMIT),
    )(*planes)

    return out.reshape(-1)[:n].reshape(shape)


# --------------------------------------------------------------------------
# Public API — mirrors SpectrogramL1Loss.forward
# --------------------------------------------------------------------------
def spectrogram_l1_loss(inp, tgt, reduction: str = "mean"):
    """Pallas implementation of SpectrogramL1Loss.forward.

    inp, tgt: complex64 arrays of identical shape (e.g. (B, C, F, T)).
    """
    if reduction not in ("mean", "sum", "none"):
        raise ValueError(f"Invalid reduction {reduction} is found.")

    shape = inp.shape

    if reduction == "none":
        return _l1_none(inp, tgt, shape)

    xf = _as_interleaved_flat_f32(inp)
    yf = _as_interleaved_flat_f32(tgt)
    total = _l1_sum(xf, yf)

    if reduction == "sum":
        return total

    # mean over (loss_real + loss_imag), which has inp.size elements
    n_elems = 1
    for s in shape:
        n_elems *= s
    return total / jnp.float32(n_elems)


if __name__ == "__main__":
    key = jax.random.PRNGKey(0)
    k1, k2, k3, k4 = jax.random.split(key, 4)

    # Complex spectrogram inputs, NCHW-style: (batch, channels, freq, frames)
    shape = (2, 4, 16, 16)
    inp = (jax.random.normal(k1, shape, dtype=jnp.float32)
           + 1j * jax.random.normal(k2, shape, dtype=jnp.float32)).astype(jnp.complex64)
    tgt = (jax.random.normal(k3, shape, dtype=jnp.float32)
           + 1j * jax.random.normal(k4, shape, dtype=jnp.float32)).astype(jnp.complex64)

    loss_mean = jax.block_until_ready(spectrogram_l1_loss(inp, tgt, "mean"))
    loss_sum = jax.block_until_ready(spectrogram_l1_loss(inp, tgt, "sum"))
    loss_none = jax.block_until_ready(spectrogram_l1_loss(inp, tgt, "none"))

    # Silent sanity-check against a pure-JAX reference.
    ref_none = (jnp.abs(jnp.real(inp) - jnp.real(tgt))
                + jnp.abs(jnp.imag(inp) - jnp.imag(tgt)))
    assert loss_none.shape == shape
    assert jnp.allclose(loss_none, ref_none, rtol=1e-6, atol=1e-6)
    assert jnp.allclose(loss_sum, jnp.sum(ref_none), rtol=1e-5, atol=1e-5)
    assert jnp.allclose(loss_mean, jnp.mean(ref_none), rtol=1e-5, atol=1e-6)

    print("KERNEL_OK")
</pallas_src>

<mosaic_0001>
module attributes {stable_mosaic.version = 11 : i64} {
  func.func @_l1_sum_kernel(%arg0: i32, %arg1: i32, %arg2: memref<32x128xf32, #tpu.memory_space<vmem>>, %arg3: memref<32x128xf32, #tpu.memory_space<vmem>>, %arg4: memref<8x128xf32, #tpu.memory_space<vmem>>, %arg5: memref<32x128xf32, #tpu.memory_space<vmem>>) attributes {dimension_semantics = [#tpu.dimension_semantics<parallel>, #tpu.dimension_semantics<arbitrary>], iteration_bounds = array<i64: 1, 1>, scalar_prefetch = 0 : i64, scratch_operands = 1 : i64, tpu.core_type = #tpu.core_type<tc>, window_params = [{transform_indices = @transform_0, window_bounds = array<i64: 32, 128>}, {transform_indices = @transform_1, window_bounds = array<i64: 32, 128>}, {transform_indices = @transform_2, window_bounds = array<i64: 8, 128>}]} {
    %c0_i32 = arith.constant 0 : i32
    %0 = arith.cmpi eq, %arg1, %c0_i32 : i32
    %1 = arith.extui %0 : i1 to i32
    %c0_i32_0 = arith.constant 0 : i32
    %2 = arith.cmpi ne, %1, %c0_i32_0 : i32
    scf.if %2 {
      %cst = arith.constant 0.000000e+00 : f32
      %13 = vector.broadcast %cst : f32 to vector<32x128xf32>
      %c0_10 = arith.constant 0 : index
      %c0_11 = arith.constant 0 : index
      %14 = vector.load %arg5[%c0_10, %c0_11] : memref<32x128xf32, #tpu.memory_space<vmem>>, vector<32x128xf32>
      tpu.vector_store %arg5[%c0_10, %c0_11], %13 {strides = array<i32>} : memref<32x128xf32, #tpu.memory_space<vmem>>, vector<32x128xf32>,
    } else {
    }
    %c0 = arith.constant 0 : index
    %c0_1 = arith.constant 0 : index
    %3 = vector.load %arg5[%c0, %c0_1] : memref<32x128xf32, #tpu.memory_space<vmem>>, vector<32x128xf32>
    %c0_2 = arith.constant 0 : index
    %c0_3 = arith.constant 0 : index
    %4 = vector.load %arg2[%c0_2, %c0_3] : memref<32x128xf32, #tpu.memory_space<vmem>>, vector<32x128xf32>
    %c0_4 = arith.constant 0 : index
    %c0_5 = arith.constant 0 : index
    %5 = vector.load %arg3[%c0_4, %c0_5] : memref<32x128xf32, #tpu.memory_space<vmem>>, vector<32x128xf32>
    %6 = arith.subf %4, %5 : vector<32x128xf32>
    %7 = math.absf %6 : vector<32x128xf32>
    %8 = arith.addf %3, %7 : vector<32x128xf32>
    %c0_6 = arith.constant 0 : index
    %c0_7 = arith.constant 0 : index
    %9 = vector.load %arg5[%c0_6, %c0_7] : memref<32x128xf32, #tpu.memory_space<vmem>>, vector<32x128xf32>
    tpu.vector_store %arg5[%c0_6, %c0_7], %8 {strides = array<i32>} : memref<32x128xf32, #tpu.memory_space<vmem>>, vector<32x128xf32>,
    %c0_i32_8 = arith.constant 0 : i32
    %10 = arith.cmpi eq, %arg1, %c0_i32_8 : i32
    %11 = arith.extui %10 : i1 to i32
    %c0_i32_9 = arith.constant 0 : i32
    %12 = arith.cmpi ne, %11, %c0_i32_9 : i32
    scf.if %12 {
      %c0_10 = arith.constant 0 : index
      %c0_11 = arith.constant 0 : index
      %13 = vector.load %arg5[%c0_10, %c0_11] : memref<32x128xf32, #tpu.memory_space<vmem>>, vector<32x128xf32>
      %14 = vector.shape_cast %13 : vector<32x128xf32> to vector<4x8x128xf32>
      %cst = arith.constant dense<0.000000e+00> : vector<8x128xf32>
      %15 = vector.multi_reduction <add>, %14, %cst [0] : vector<4x8x128xf32> to vector<8x128xf32>
      %c0_12 = arith.constant 0 : index
      %c0_13 = arith.constant 0 : index
      %16 = vector.load %arg4[%c0_12, %c0_13] : memref<8x128xf32, #tpu.memory_space<vmem>>, vector<8x128xf32>
      tpu.vector_store %arg4[%c0_12, %c0_13], %15 {strides = array<i32>} : memref<8x128xf32, #tpu.memory_space<vmem>>, vector<8x128xf32>,
    } else {
    }
    return
  }
  func.func @transform_0(%arg0: i32, %arg1: i32) -> (i32, i32) {
    %c1_i32 = arith.constant 1 : i32
    %0 = arith.muli %arg0, %c1_i32 : i32
    %1 = arith.addi %0, %arg1 : i32
    %c0_i32 = arith.constant 0 : i32
    %c0_i32_0 = arith.constant 0 : i32
    return %1, %c0_i32 : i32, i32
  }
  func.func @transform_1(%arg0: i32, %arg1: i32) -> (i32, i32) {
    %c1_i32 = arith.constant 1 : i32
    %0 = arith.muli %arg0, %c1_i32 : i32
    %1 = arith.addi %0, %arg1 : i32
    %c0_i32 = arith.constant 0 : i32
    %c0_i32_0 = arith.constant 0 : i32
    return %1, %c0_i32 : i32, i32
  }
  func.func @transform_2(%arg0: i32, %arg1: i32) -> (i32, i32) {
    %c0_i32 = arith.constant 0 : i32
    %c0_i32_0 = arith.constant 0 : i32
    return %arg0, %c0_i32 : i32, i32
  }
}

</mosaic_0001>

<llo_original>
// kernel: tpu_custom_call.1
$region0: #{tpu_custom_call.1}
  #allocation0 [shape = 'u32[]', space=smem, size = 0x4, offset = 0x4, fixed_abs, tag = 'smem constant byte address 0x4 - core index']
  #allocation1 [shape = 'u32[144,128]{1,0:T(1,128)}', space=vmem, size = 0x12000, scoped, tag = 'internal scratch']
  #allocation2 [shape = 'f32[32,128]{1,0:T(8,128)}', space=vmem, size = 0x4000, scoped, tag = 'scratch operand']
  %s0 = inlined_call_operand.hbm [shape: f32[32,128], index: 0, kind: input, shape index: {}]
  %s1 = inlined_call_operand.hbm [shape: f32[32,128], index: 1, kind: input, shape index: {}]
  %s2 = inlined_call_operand.hbm [shape: f32[8,128], index: 2, kind: output, shape index: {}]
  %s3 = sld [smem:[#allocation0]]
  $region34: #{tpu_custom_call.1} parent=0
    _
  %s5 = ssub.s32 1, %s3
  %s6 = scalar_select 0, %s5, %s3
  $region1: #{tpu_custom_call.1} parent=0
    #allocation3 [shape = 'u8[16384]{0}', space=vmem, size = 0x4000, scoped, tag = 'input window, operand 0, single buffered']
    #allocation4 [shape = 's32[1]{0}', space=sflag, size = 0x4, scoped, tag = 'scoped memory for tpu_custom_call.1']
    #allocation5 [shape = 's32[1]{0}', space=sflag, size = 0x4, scoped, tag = 'scoped memory for tpu_custom_call.1']
    #allocation6 [shape = 'u8[16384]{0}', space=vmem, size = 0x4000, scoped, tag = 'input window, operand 1, single buffered']
    #allocation7 [shape = 's32[1]{0}', space=sflag, size = 0x4, scoped, tag = 'scoped memory for tpu_custom_call.1']
    #allocation8 [shape = 'u8[4096]{0}', space=vmem, size = 0x1000, scoped, tag = 'output window, operand 0, single buffered']
    %7 = vsyncpa [#allocation4], 0
    %8 = vsyncpa [#allocation7], 0
    %9 = vsyncpa [#allocation5], 0
    // Predicated region
    $region2: #{tpu_custom_call.1} parent=1 // pred_check
      _
    $region3: #{tpu_custom_call.1} parent=1 // pred_check_branch
      %11 = sbr.rel (0) target = $region5
    $region4: #{tpu_custom_call.1} parent=1 // pred_region
      %s12 = sadd.s32 0, 0
      %s13 = smul.u32 4, %s12
      %s15 = ssub.s32 512, 512
      %16 = vsyncadd [#allocation4], %s15
      %s17 = smul.addr %s13, 128
      %s18 = scalar_lea.hbm %s0, %s17
      %s19 = sshll.u32 [#allocation3], 4
      %s20 = int_to_ptr.vmem [resolvable:$true] %s19
      %25 = dma.hbm_to_vmem [thread:$0]  %s18, 512, %s20, [#allocation4], 128, 128, 8
    $region5: #{tpu_custom_call.1} parent=1 // pred_fallthru
      _
    // Predicated region
    $region6: #{tpu_custom_call.1} parent=1 // pred_check
      _
    $region7: #{tpu_custom_call.1} parent=1 // pred_check_branch
      %27 = sbr.rel (0) target = $region9
    $region8: #{tpu_custom_call.1} parent=1 // pred_region
      %s28 = sadd.s32 0, 0
      %s29 = smul.u32 4, %s28
      %s31 = ssub.s32 512, 512
      %32 = vsyncadd [#allocation7], %s31
      %s33 = smul.addr %s29, 128
      %s34 = scalar_lea.hbm %s1, %s33
      %s35 = sshll.u32 [#allocation6], 4
      %s36 = int_to_ptr.vmem [resolvable:$true] %s35
      %41 = dma.hbm_to_vmem [thread:$0]  %s34, 512, %s36, [#allocation7], 128, 128, 8
    $region9: #{tpu_custom_call.1} parent=1 // pred_fallthru
      _
    // Predicated region
    $region10: #{tpu_custom_call.1} parent=1 // pred_check
      _
    $region11: #{tpu_custom_call.1} parent=1 // pred_check_branch
      %43 = sbr.rel (0) target = $region13
    $region12: #{tpu_custom_call.1} parent=1 // pred_region
      %44 = dma.done [#allocation4], 512
    $region13: #{tpu_custom_call.1} parent=1 // pred_fallthru
      _
    // Predicated region
    $region14: #{tpu_custom_call.1} parent=1 // pred_check
      _
    $region15: #{tpu_custom_call.1} parent=1 // pred_check_branch
      %46 = sbr.rel (0) target = $region17
    $region16: #{tpu_custom_call.1} parent=1 // pred_region
      %47 = dma.done [#allocation7], 512
    $region17: #{tpu_custom_call.1} parent=1 // pred_fallthru
      _
    %s48 = sadd.s32 0, 0
    %s49 = smul.u32 4, %s48
    %s50 = sadd.s32 0, 0
    %s51 = smul.u32 4, %s50
    %p52 = scmp.eq.s32.totalorder 0, 0
    // Predicated region
    $region18: #{tpu_custom_call.1} parent=1 // pred_check
      %p53 = pneg %p52
    $region19: #{tpu_custom_call.1} parent=1 // pred_check_branch
      %55 = sbr.rel (%p53) target = $region21
    $region20: #{tpu_custom_call.1} parent=1 // pred_region
      %56 = vst [vmem:[#allocation2] sm:$0xff] 0.0
      %57 = vst [vmem:[#allocation2 + $0x8] sm:$0xff] 0.0
      %58 = vst [vmem:[#allocation2 + $0x10] sm:$0xff] 0.0
      %59 = vst [vmem:[#allocation2 + $0x18] sm:$0xff] 0.0
    $region21: #{tpu_custom_call.1} parent=1 // pred_fallthru
      _
    %v60 = vld [vmem:[#allocation2] sm:$0xff]
    %v61 = vld [vmem:[#allocation2 + $0x8] sm:$0xff]
    %v62 = vld [vmem:[#allocation2 + $0x10] sm:$0xff]
    %v63 = vld [vmem:[#allocation2 + $0x18] sm:$0xff]
    %v64 = vld [vmem:[#allocation3] sm:$0xff]
    %v65 = vld [vmem:[#allocation3 + $0x8] sm:$0xff]
    %v66 = vld [vmem:[#allocation3 + $0x10] sm:$0xff]
    %v67 = vld [vmem:[#allocation3 + $0x18] sm:$0xff]
    %v68 = vld [vmem:[#allocation6] sm:$0xff]
    %v69 = vld [vmem:[#allocation6 + $0x8] sm:$0xff]
    %v70 = vld [vmem:[#allocation6 + $0x10] sm:$0xff]
    %v71 = vld [vmem:[#allocation6 + $0x18] sm:$0xff]
    %v72 = vsub.f32 %v64, %v68
    %v73 = vsub.f32 %v65, %v69
    %v74 = vsub.f32 %v66, %v70
    %v75 = vsub.f32 %v67, %v71
    %v76 = vand.u32 2147483647, %v72
    %v77 = vand.u32 2147483647, %v73
    %v78 = vand.u32 2147483647, %v74
    %v79 = vand.u32 2147483647, %v75
    %v80 = vadd.f32 %v60, %v76
    %v81 = vadd.f32 %v61, %v77
    %v82 = vadd.f32 %v62, %v78
    %v83 = vadd.f32 %v63, %v79
    %84 = vst [vmem:[#allocation2] sm:$0xff] %v80
    %85 = vst [vmem:[#allocation2 + $0x8] sm:$0xff] %v81
    %86 = vst [vmem:[#allocation2 + $0x10] sm:$0xff] %v82
    %87 = vst [vmem:[#allocation2 + $0x18] sm:$0xff] %v83
    // Predicated region
    $region22: #{tpu_custom_call.1} parent=1 // pred_check
      %p88 = pneg %p52
    $region23: #{tpu_custom_call.1} parent=1 // pred_check_branch
      %90 = sbr.rel (%p88) target = $region25
    $region24: #{tpu_custom_call.1} parent=1 // pred_region
      %v91 = vld [vmem:[#allocation2] sm:$0xff]
      %v92 = vld [vmem:[#allocation2 + $0x8] sm:$0xff]
      %v93 = vld [vmem:[#allocation2 + $0x10] sm:$0xff]
      %v94 = vld [vmem:[#allocation2 + $0x18] sm:$0xff]
      %v95 = vadd.f32 %v91, %v92
      %v96 = vadd.f32 %v95, %v93
      %v97 = vadd.f32 %v96, %v94
      %98 = vst [vmem:[#allocation8] sm:$0xff] %v97
    $region25: #{tpu_custom_call.1} parent=1 // pred_fallthru
      _
    // Predicated region
    $region26: #{tpu_custom_call.1} parent=1 // pred_check
      _
    $region27: #{tpu_custom_call.1} parent=1 // pred_check_branch
      %100 = sbr.rel (0) target = $region29
    $region28: #{tpu_custom_call.1} parent=1 // pred_region
      %s102 = ssub.s32 128, 128
      %103 = vsyncadd [#allocation5], %s102
      %s105 = sshll.u32 [#allocation8], 4
      %s106 = int_to_ptr.vmem [resolvable:$true] %s105
      %108 = dma.vmem_to_hbm [thread:$0]  %s106, 128, %s2, [#allocation5]
    $region29: #{tpu_custom_call.1} parent=1 // pred_fallthru
      _
    // Predicated region
    $region30: #{tpu_custom_call.1} parent=1 // pred_check
      _
    $region31: #{tpu_custom_call.1} parent=1 // pred_check_branch
      %110 = sbr.rel (0) target = $region33
    $region32: #{tpu_custom_call.1} parent=1 // pred_region
      %111 = dma.done [#allocation5], 128
    $region33: #{tpu_custom_call.1} parent=1 // pred_fallthru
      _
    %112 = vsyncpa [#allocation4], 1
    %113 = vsyncpa [#allocation7], 1
    %114 = vsyncpa [#allocation5], 1

</llo_original>
